<compile_context>
chip_gen: v5e
topology: v5e:2x2
jax: 0.10.0
libtpu: 0.0.40
codegen_flags: <defaults>
</compile_context>

<pallas_src>
import functools

import jax
import jax.numpy as jnp
from jax.experimental import pallas as pl
from jax.experimental.pallas import tpu as pltpu


def dense_layer_kernel(x_ref, w_ref, b_ref, o_ref, *, W):
    # x_ref: (1, C_in, HW + 2*(W+1))   zero-padded, flattened spatial on lanes
    # w_ref: (C_out, 9*C_in)           column k*C_in + ci == weight[:, ci, ky+1, kx+1]
    # b_ref: (C_out, 1)
    # o_ref: (1, C_in + C_out, HW)
    C_tot, HW = o_ref.shape[1], o_ref.shape[2]
    C_in = x_ref.shape[1]
    C_out = C_tot - C_in
    pad = W + 1

    xp = x_ref[0]            # (C_in, HW + 2*pad), f32 -- loaded once
    w_all = w_ref[...]       # (C_out, 9*C_in), tiny (one vreg)

    # Column index of every flattened spatial position (hoisted out of the tap loop).
    col = jax.lax.broadcasted_iota(jnp.int32, (1, HW), 1) % W
    left_ok = col >= 1              # valid outputs for taps with kx == -1
    right_ok = col <= W - 2         # valid outputs for taps with kx == +1

    x_img = xp[:, pad:pad + HW]     # un-padded image, reused for the concat

    acc = jnp.zeros((C_out, HW), dtype=jnp.float32)
    k = 0
    for ky in (-1, 0, 1):
        for kx in (-1, 0, 1):
            if ky == 0 and kx == 0:
                sh = x_img
            else:
                st = pad + ky * W + kx          # static in-bounds lane slice
                sh = xp[:, st:st + HW]          # (C_in, HW)
                if kx == -1:
                    sh = jnp.where(left_ok, sh, 0.0)
                elif kx == 1:
                    sh = jnp.where(right_ok, sh, 0.0)
                # (ky = +-1 rows out of the image read the zero pad -> no row mask)
            # VPU broadcast-FMA: acc[co, p] += w[co, k*C_in+ci] * sh[ci, p]
            for ci in range(C_in):
                idx = k * C_in + ci
                acc = acc + w_all[:, idx:idx + 1] * sh[ci:ci + 1, :]
            k += 1

    y = jnp.maximum(acc + b_ref[...], 0.0)      # bias + ReLU, (C_out, HW)

    # Channel concat [x, relu(conv(x))].  Lane dim is HW (multiple of 128), so
    # both stores are full-lane-width vst's; the sublane split at C_in=4 is
    # unavoidable (C_in < 8) and cheap.
    o_ref[0, :C_in, :] = x_img
    o_ref[0, C_in:, :] = y


@jax.jit
def dense_layer(x_nchw, w_oihw, b):
    """PyTorch-equivalent forward: NCHW in, NCHW out (input concat conv-relu)."""
    N, C_in, H, W = x_nchw.shape
    C_out = w_oihw.shape[0]
    HW = H * W
    C_tot = C_in + C_out
    pad = W + 1
    HWp = HW + 2 * pad

    # NCHW -> (N, C_in, H*W) is a pure reshape (no HBM transpose); pad the
    # flattened spatial axis once in HBM so the kernel never pads.
    x_flat = x_nchw.reshape(N, C_in, HW)
    x_pad = jnp.pad(x_flat, ((0, 0), (0, 0), (pad, pad)))

    # OIHW -> (C_out, 3*3*C_in), flattened in (ky, kx, ci) order.  Tiny, done once.
    w_flat = jnp.transpose(w_oihw, (0, 2, 3, 1)).reshape(C_out, 9 * C_in)
    b_col = b.reshape(C_out, 1)

    out_flat = pl.pallas_call(
        functools.partial(dense_layer_kernel, W=W),
        out_shape=jax.ShapeDtypeStruct((N, C_tot, HW), jnp.float32),
        grid_spec=pltpu.PrefetchScalarGridSpec(
            num_scalar_prefetch=0,
            grid=(N,),
            in_specs=[
                pl.BlockSpec((1, C_in, HWp), lambda n: (n, 0, 0)),
                pl.BlockSpec((C_out, 9 * C_in), lambda n: (0, 0)),
                pl.BlockSpec((C_out, 1), lambda n: (0, 0)),
            ],
            out_specs=pl.BlockSpec((1, C_tot, HW), lambda n: (n, 0, 0)),
        ),
        compiler_params=pltpu.CompilerParams(
            dimension_semantics=("parallel",)),
    )(x_pad, w_flat, b_col)

    # (N, C_tot, H*W) -> NCHW is again a pure reshape.
    return out_flat.reshape(N, C_tot, H, W)


def reference_dense_layer(x_nchw, w_oihw, b):
    y = jax.lax.conv_general_dilated(
        x_nchw, w_oihw, window_strides=(1, 1), padding=((1, 1), (1, 1)),
        dimension_numbers=("NCHW", "OIHW", "NCHW"))
    y = jnp.maximum(y + b.reshape(1, -1, 1, 1), 0.0)
    return jnp.concatenate([x_nchw, y], axis=1)


if __name__ == "__main__":
    # Small shapes consistent with the module: N=2, C_in=4, C_out=8, H=W=16
    N, C_in, C_out, H, W = 2, 4, 8, 16, 16

    key = jax.random.PRNGKey(0)
    kx_, kw_, kb_ = jax.random.split(key, 3)
    x = jax.random.normal(kx_, (N, C_in, H, W), dtype=jnp.float32)
    # deterministic Conv2d-like init (uniform in +/- 1/sqrt(fan_in))
    fan_in = C_in * 3 * 3
    bound = 1.0 / (fan_in ** 0.5)
    w = jax.random.uniform(kw_, (C_out, C_in, 3, 3), jnp.float32, -bound, bound)
    b = jax.random.uniform(kb_, (C_out,), jnp.float32, -bound, bound)

    out = jax.block_until_ready(dense_layer(x, w, b))
    ref = jax.block_until_ready(reference_dense_layer(x, w, b))

    assert out.shape == (N, C_in + C_out, H, W)
    assert jnp.allclose(out, ref, atol=1e-5, rtol=1e-5)
    print("KERNEL_OK")
</pallas_src>

<mosaic_0001>
module attributes {stable_mosaic.version = 11 : i64} {
  func.func @dense_layer_kernel(%arg0: i32, %arg1: memref<1x4x290xf32, #tpu.memory_space<vmem>>, %arg2: memref<8x36xf32, #tpu.memory_space<vmem>>, %arg3: memref<8x1xf32, #tpu.memory_space<vmem>>, %arg4: memref<1x12x256xf32, #tpu.memory_space<vmem>>) attributes {dimension_semantics = [#tpu.dimension_semantics<parallel>], iteration_bounds = array<i64: 2>, scalar_prefetch = 0 : i64, scratch_operands = 0 : i64, tpu.core_type = #tpu.core_type<tc>, window_params = [{transform_indices = @transform_0, window_bounds = array<i64: 1, 4, 290>}, {pipeline_mode = #tpu.pipeline_mode<synchronous>, transform_indices = @transform_1, window_bounds = array<i64: 8, 36>}, {pipeline_mode = #tpu.pipeline_mode<synchronous>, transform_indices = @transform_2, window_bounds = array<i64: 8, 1>}, {transform_indices = @transform_3, window_bounds = array<i64: 1, 12, 256>}]} {
    %c0 = arith.constant 0 : index
    %c0_0 = arith.constant 0 : index
    %c0_1 = arith.constant 0 : index
    %0 = vector.load %arg1[%c0, %c0_0, %c0_1] : memref<1x4x290xf32, #tpu.memory_space<vmem>>, vector<1x4x290xf32>
    %1 = vector.shape_cast %0 : vector<1x4x290xf32> to vector<4x290xf32>
    %c0_2 = arith.constant 0 : index
    %c0_3 = arith.constant 0 : index
    %2 = vector.load %arg2[%c0_2, %c0_3] : memref<8x36xf32, #tpu.memory_space<vmem>>, vector<8x36xf32>
    %3 = tpu.iota {dimensions = array<i32: 1>} : vector<1x256xi32>
    %c16_i32 = arith.constant 16 : i32
    %c0_i32 = arith.constant 0 : i32
    %4 = arith.cmpi eq, %c16_i32, %c0_i32 : i32
    %c1_i32 = arith.constant 1 : i32
    %5 = arith.select %4, %c1_i32, %c16_i32 : i32
    %6 = vector.broadcast %5 : i32 to vector<1x256xi32>
    %7 = arith.remsi %3, %6 : vector<1x256xi32>
    %c0_i32_4 = arith.constant 0 : i32
    %8 = vector.broadcast %c0_i32_4 : i32 to vector<1x256xi32>
    %9 = arith.cmpi ne, %7, %8 : vector<1x256xi32>
    %c0_i32_5 = arith.constant 0 : i32
    %10 = vector.broadcast %c0_i32_5 : i32 to vector<1x256xi32>
    %11 = arith.cmpi slt, %7, %10 : vector<1x256xi32>
    %c0_i32_6 = arith.constant 0 : i32
    %12 = arith.cmpi slt, %5, %c0_i32_6 : i32
    %13 = vector.broadcast %12 : i1 to vector<1x256xi1>
    %14 = vector.broadcast %13 : vector<1x256xi1> to vector<1x256xi1>
    %15 = arith.xori %11, %14 : vector<1x256xi1>
    %16 = arith.andi %15, %9 : vector<1x256xi1>
    %17 = vector.broadcast %5 : i32 to vector<1x256xi32>
    %18 = arith.addi %7, %17 : vector<1x256xi32>
    %19 = arith.select %16, %18, %7 : vector<1x256xi1>, vector<1x256xi32>
    %c1_i32_7 = arith.constant 1 : i32
    %20 = vector.broadcast %c1_i32_7 : i32 to vector<1x256xi32>
    %21 = arith.cmpi sge, %19, %20 : vector<1x256xi32>
    %c14_i32 = arith.constant 14 : i32
    %22 = vector.broadcast %c14_i32 : i32 to vector<1x256xi32>
    %23 = arith.cmpi sle, %19, %22 : vector<1x256xi32>
    %24 = vector.extract_strided_slice %1 {offsets = [0, 17], sizes = [4, 256], strides = [1, 1]} : vector<4x290xf32> to vector<4x256xf32>
    %cst = arith.constant 0.000000e+00 : f32
    %25 = vector.broadcast %cst : f32 to vector<8x256xf32>
    %26 = vector.extract_strided_slice %1 {offsets = [0, 0], sizes = [4, 256], strides = [1, 1]} : vector<4x290xf32> to vector<4x256xf32>
    %cst_8 = arith.constant 0.000000e+00 : f32
    %27 = vector.shape_cast %21 : vector<1x256xi1> to vector<1x256xi1>
    %28 = vector.broadcast %27 : vector<1x256xi1> to vector<4x256xi1>
    %29 = vector.broadcast %cst_8 : f32 to vector<4x256xf32>
    %30 = arith.select %28, %26, %29 : vector<4x256xi1>, vector<4x256xf32>
    %31 = vector.extract_strided_slice %2 {offsets = [0, 0], sizes = [8, 1], strides = [1, 1]} : vector<8x36xf32> to vector<8x1xf32>
    %32 = vector.extract_strided_slice %30 {offsets = [0, 0], sizes = [1, 256], strides = [1, 1]} : vector<4x256xf32> to vector<1x256xf32>
    %33 = vector.broadcast %31 : vector<8x1xf32> to vector<8x256xf32>
    %34 = vector.broadcast %32 : vector<1x256xf32> to vector<8x256xf32>
    %35 = arith.mulf %33, %34 : vector<8x256xf32>
    %36 = arith.addf %25, %35 : vector<8x256xf32>
    %37 = vector.extract_strided_slice %2 {offsets = [0, 1], sizes = [8, 1], strides = [1, 1]} : vector<8x36xf32> to vector<8x1xf32>
    %38 = vector.extract_strided_slice %30 {offsets = [1, 0], sizes = [1, 256], strides = [1, 1]} : vector<4x256xf32> to vector<1x256xf32>
    %39 = vector.broadcast %37 : vector<8x1xf32> to vector<8x256xf32>
    %40 = vector.broadcast %38 : vector<1x256xf32> to vector<8x256xf32>
    %41 = arith.mulf %39, %40 : vector<8x256xf32>
    %42 = arith.addf %36, %41 : vector<8x256xf32>
    %43 = vector.extract_strided_slice %2 {offsets = [0, 2], sizes = [8, 1], strides = [1, 1]} : vector<8x36xf32> to vector<8x1xf32>
    %44 = vector.extract_strided_slice %30 {offsets = [2, 0], sizes = [1, 256], strides = [1, 1]} : vector<4x256xf32> to vector<1x256xf32>
    %45 = vector.broadcast %43 : vector<8x1xf32> to vector<8x256xf32>
    %46 = vector.broadcast %44 : vector<1x256xf32> to vector<8x256xf32>
    %47 = arith.mulf %45, %46 : vector<8x256xf32>
    %48 = arith.addf %42, %47 : vector<8x256xf32>
    %49 = vector.extract_strided_slice %2 {offsets = [0, 3], sizes = [8, 1], strides = [1, 1]} : vector<8x36xf32> to vector<8x1xf32>
    %50 = vector.extract_strided_slice %30 {offsets = [3, 0], sizes = [1, 256], strides = [1, 1]} : vector<4x256xf32> to vector<1x256xf32>
    %51 = vector.broadcast %49 : vector<8x1xf32> to vector<8x256xf32>
    %52 = vector.broadcast %50 : vector<1x256xf32> to vector<8x256xf32>
    %53 = arith.mulf %51, %52 : vector<8x256xf32>
    %54 = arith.addf %48, %53 : vector<8x256xf32>
    %55 = vector.extract_strided_slice %1 {offsets = [0, 1], sizes = [4, 256], strides = [1, 1]} : vector<4x290xf32> to vector<4x256xf32>
    %56 = vector.extract_strided_slice %2 {offsets = [0, 4], sizes = [8, 1], strides = [1, 1]} : vector<8x36xf32> to vector<8x1xf32>
    %57 = vector.extract_strided_slice %55 {offsets = [0, 0], sizes = [1, 256], strides = [1, 1]} : vector<4x256xf32> to vector<1x256xf32>
    %58 = vector.broadcast %56 : vector<8x1xf32> to vector<8x256xf32>
    %59 = vector.broadcast %57 : vector<1x256xf32> to vector<8x256xf32>
    %60 = arith.mulf %58, %59 : vector<8x256xf32>
    %61 = arith.addf %54, %60 : vector<8x256xf32>
    %62 = vector.extract_strided_slice %2 {offsets = [0, 5], sizes = [8, 1], strides = [1, 1]} : vector<8x36xf32> to vector<8x1xf32>
    %63 = vector.extract_strided_slice %55 {offsets = [1, 0], sizes = [1, 256], strides = [1, 1]} : vector<4x256xf32> to vector<1x256xf32>
    %64 = vector.broadcast %62 : vector<8x1xf32> to vector<8x256xf32>
    %65 = vector.broadcast %63 : vector<1x256xf32> to vector<8x256xf32>
    %66 = arith.mulf %64, %65 : vector<8x256xf32>
    %67 = arith.addf %61, %66 : vector<8x256xf32>
    %68 = vector.extract_strided_slice %2 {offsets = [0, 6], sizes = [8, 1], strides = [1, 1]} : vector<8x36xf32> to vector<8x1xf32>
    %69 = vector.extract_strided_slice %55 {offsets = [2, 0], sizes = [1, 256], strides = [1, 1]} : vector<4x256xf32> to vector<1x256xf32>
    %70 = vector.broadcast %68 : vector<8x1xf32> to vector<8x256xf32>
    %71 = vector.broadcast %69 : vector<1x256xf32> to vector<8x256xf32>
    %72 = arith.mulf %70, %71 : vector<8x256xf32>
    %73 = arith.addf %67, %72 : vector<8x256xf32>
    %74 = vector.extract_strided_slice %2 {offsets = [0, 7], sizes = [8, 1], strides = [1, 1]} : vector<8x36xf32> to vector<8x1xf32>
    %75 = vector.extract_strided_slice %55 {offsets = [3, 0], sizes = [1, 256], strides = [1, 1]} : vector<4x256xf32> to vector<1x256xf32>
    %76 = vector.broadcast %74 : vector<8x1xf32> to vector<8x256xf32>
    %77 = vector.broadcast %75 : vector<1x256xf32> to vector<8x256xf32>
    %78 = arith.mulf %76, %77 : vector<8x256xf32>
    %79 = arith.addf %73, %78 : vector<8x256xf32>
    %80 = vector.extract_strided_slice %1 {offsets = [0, 2], sizes = [4, 256], strides = [1, 1]} : vector<4x290xf32> to vector<4x256xf32>
    %cst_9 = arith.constant 0.000000e+00 : f32
    %81 = vector.shape_cast %23 : vector<1x256xi1> to vector<1x256xi1>
    %82 = vector.broadcast %81 : vector<1x256xi1> to vector<4x256xi1>
    %83 = vector.broadcast %cst_9 : f32 to vector<4x256xf32>
    %84 = arith.select %82, %80, %83 : vector<4x256xi1>, vector<4x256xf32>
    %85 = vector.extract_strided_slice %2 {offsets = [0, 8], sizes = [8, 1], strides = [1, 1]} : vector<8x36xf32> to vector<8x1xf32>
    %86 = vector.extract_strided_slice %84 {offsets = [0, 0], sizes = [1, 256], strides = [1, 1]} : vector<4x256xf32> to vector<1x256xf32>
    %87 = vector.broadcast %85 : vector<8x1xf32> to vector<8x256xf32>
    %88 = vector.broadcast %86 : vector<1x256xf32> to vector<8x256xf32>
    %89 = arith.mulf %87, %88 : vector<8x256xf32>
    %90 = arith.addf %79, %89 : vector<8x256xf32>
    %91 = vector.extract_strided_slice %2 {offsets = [0, 9], sizes = [8, 1], strides = [1, 1]} : vector<8x36xf32> to vector<8x1xf32>
    %92 = vector.extract_strided_slice %84 {offsets = [1, 0], sizes = [1, 256], strides = [1, 1]} : vector<4x256xf32> to vector<1x256xf32>
    %93 = vector.broadcast %91 : vector<8x1xf32> to vector<8x256xf32>
    %94 = vector.broadcast %92 : vector<1x256xf32> to vector<8x256xf32>
    %95 = arith.mulf %93, %94 : vector<8x256xf32>
    %96 = arith.addf %90, %95 : vector<8x256xf32>
    %97 = vector.extract_strided_slice %2 {offsets = [0, 10], sizes = [8, 1], strides = [1, 1]} : vector<8x36xf32> to vector<8x1xf32>
    %98 = vector.extract_strided_slice %84 {offsets = [2, 0], sizes = [1, 256], strides = [1, 1]} : vector<4x256xf32> to vector<1x256xf32>
    %99 = vector.broadcast %97 : vector<8x1xf32> to vector<8x256xf32>
    %100 = vector.broadcast %98 : vector<1x256xf32> to vector<8x256xf32>
    %101 = arith.mulf %99, %100 : vector<8x256xf32>
    %102 = arith.addf %96, %101 : vector<8x256xf32>
    %103 = vector.extract_strided_slice %2 {offsets = [0, 11], sizes = [8, 1], strides = [1, 1]} : vector<8x36xf32> to vector<8x1xf32>
    %104 = vector.extract_strided_slice %84 {offsets = [3, 0], sizes = [1, 256], strides = [1, 1]} : vector<4x256xf32> to vector<1x256xf32>
    %105 = vector.broadcast %103 : vector<8x1xf32> to vector<8x256xf32>
    %106 = vector.broadcast %104 : vector<1x256xf32> to vector<8x256xf32>
    %107 = arith.mulf %105, %106 : vector<8x256xf32>
    %108 = arith.addf %102, %107 : vector<8x256xf32>
    %109 = vector.extract_strided_slice %1 {offsets = [0, 16], sizes = [4, 256], strides = [1, 1]} : vector<4x290xf32> to vector<4x256xf32>
    %cst_10 = arith.constant 0.000000e+00 : f32
    %110 = vector.shape_cast %21 : vector<1x256xi1> to vector<1x256xi1>
    %111 = vector.broadcast %110 : vector<1x256xi1> to vector<4x256xi1>
    %112 = vector.broadcast %cst_10 : f32 to vector<4x256xf32>
    %113 = arith.select %111, %109, %112 : vector<4x256xi1>, vector<4x256xf32>
    %114 = vector.extract_strided_slice %2 {offsets = [0, 12], sizes = [8, 1], strides = [1, 1]} : vector<8x36xf32> to vector<8x1xf32>
    %115 = vector.extract_strided_slice %113 {offsets = [0, 0], sizes = [1, 256], strides = [1, 1]} : vector<4x256xf32> to vector<1x256xf32>
    %116 = vector.broadcast %114 : vector<8x1xf32> to vector<8x256xf32>
    %117 = vector.broadcast %115 : vector<1x256xf32> to vector<8x256xf32>
    %118 = arith.mulf %116, %117 : vector<8x256xf32>
    %119 = arith.addf %108, %118 : vector<8x256xf32>
    %120 = vector.extract_strided_slice %2 {offsets = [0, 13], sizes = [8, 1], strides = [1, 1]} : vector<8x36xf32> to vector<8x1xf32>
    %121 = vector.extract_strided_slice %113 {offsets = [1, 0], sizes = [1, 256], strides = [1, 1]} : vector<4x256xf32> to vector<1x256xf32>
    %122 = vector.broadcast %120 : vector<8x1xf32> to vector<8x256xf32>
    %123 = vector.broadcast %121 : vector<1x256xf32> to vector<8x256xf32>
    %124 = arith.mulf %122, %123 : vector<8x256xf32>
    %125 = arith.addf %119, %124 : vector<8x256xf32>
    %126 = vector.extract_strided_slice %2 {offsets = [0, 14], sizes = [8, 1], strides = [1, 1]} : vector<8x36xf32> to vector<8x1xf32>
    %127 = vector.extract_strided_slice %113 {offsets = [2, 0], sizes = [1, 256], strides = [1, 1]} : vector<4x256xf32> to vector<1x256xf32>
    %128 = vector.broadcast %126 : vector<8x1xf32> to vector<8x256xf32>
    %129 = vector.broadcast %127 : vector<1x256xf32> to vector<8x256xf32>
    %130 = arith.mulf %128, %129 : vector<8x256xf32>
    %131 = arith.addf %125, %130 : vector<8x256xf32>
    %132 = vector.extract_strided_slice %2 {offsets = [0, 15], sizes = [8, 1], strides = [1, 1]} : vector<8x36xf32> to vector<8x1xf32>
    %133 = vector.extract_strided_slice %113 {offsets = [3, 0], sizes = [1, 256], strides = [1, 1]} : vector<4x256xf32> to vector<1x256xf32>
    %134 = vector.broadcast %132 : vector<8x1xf32> to vector<8x256xf32>
    %135 = vector.broadcast %133 : vector<1x256xf32> to vector<8x256xf32>
    %136 = arith.mulf %134, %135 : vector<8x256xf32>
    %137 = arith.addf %131, %136 : vector<8x256xf32>
    %138 = vector.extract_strided_slice %2 {offsets = [0, 16], sizes = [8, 1], strides = [1, 1]} : vector<8x36xf32> to vector<8x1xf32>
    %139 = vector.extract_strided_slice %24 {offsets = [0, 0], sizes = [1, 256], strides = [1, 1]} : vector<4x256xf32> to vector<1x256xf32>
    %140 = vector.broadcast %138 : vector<8x1xf32> to vector<8x256xf32>
    %141 = vector.broadcast %139 : vector<1x256xf32> to vector<8x256xf32>
    %142 = arith.mulf %140, %141 : vector<8x256xf32>
    %143 = arith.addf %137, %142 : vector<8x256xf32>
    %144 = vector.extract_strided_slice %2 {offsets = [0, 17], sizes = [8, 1], strides = [1, 1]} : vector<8x36xf32> to vector<8x1xf32>
    %145 = vector.extract_strided_slice %24 {offsets = [1, 0], sizes = [1, 256], strides = [1, 1]} : vector<4x256xf32> to vector<1x256xf32>
    %146 = vector.broadcast %144 : vector<8x1xf32> to vector<8x256xf32>
    %147 = vector.broadcast %145 : vector<1x256xf32> to vector<8x256xf32>
    %148 = arith.mulf %146, %147 : vector<8x256xf32>
    %149 = arith.addf %143, %148 : vector<8x256xf32>
    %150 = vector.extract_strided_slice %2 {offsets = [0, 18], sizes = [8, 1], strides = [1, 1]} : vector<8x36xf32> to vector<8x1xf32>
    %151 = vector.extract_strided_slice %24 {offsets = [2, 0], sizes = [1, 256], strides = [1, 1]} : vector<4x256xf32> to vector<1x256xf32>
    %152 = vector.broadcast %150 : vector<8x1xf32> to vector<8x256xf32>
    %153 = vector.broadcast %151 : vector<1x256xf32> to vector<8x256xf32>
    %154 = arith.mulf %152, %153 : vector<8x256xf32>
    %155 = arith.addf %149, %154 : vector<8x256xf32>
    %156 = vector.extract_strided_slice %2 {offsets = [0, 19], sizes = [8, 1], strides = [1, 1]} : vector<8x36xf32> to vector<8x1xf32>
    %157 = vector.extract_strided_slice %24 {offsets = [3, 0], sizes = [1, 256], strides = [1, 1]} : vector<4x256xf32> to vector<1x256xf32>
    %158 = vector.broadcast %156 : vector<8x1xf32> to vector<8x256xf32>
    %159 = vector.broadcast %157 : vector<1x256xf32> to vector<8x256xf32>
    %160 = arith.mulf %158, %159 : vector<8x256xf32>
    %161 = arith.addf %155, %160 : vector<8x256xf32>
    %162 = vector.extract_strided_slice %1 {offsets = [0, 18], sizes = [4, 256], strides = [1, 1]} : vector<4x290xf32> to vector<4x256xf32>
    %cst_11 = arith.constant 0.000000e+00 : f32
    %163 = vector.shape_cast %23 : vector<1x256xi1> to vector<1x256xi1>
    %164 = vector.broadcast %163 : vector<1x256xi1> to vector<4x256xi1>
    %165 = vector.broadcast %cst_11 : f32 to vector<4x256xf32>
    %166 = arith.select %164, %162, %165 : vector<4x256xi1>, vector<4x256xf32>
    %167 = vector.extract_strided_slice %2 {offsets = [0, 20], sizes = [8, 1], strides = [1, 1]} : vector<8x36xf32> to vector<8x1xf32>
    %168 = vector.extract_strided_slice %166 {offsets = [0, 0], sizes = [1, 256], strides = [1, 1]} : vector<4x256xf32> to vector<1x256xf32>
    %169 = vector.broadcast %167 : vector<8x1xf32> to vector<8x256xf32>
    %170 = vector.broadcast %168 : vector<1x256xf32> to vector<8x256xf32>
    %171 = arith.mulf %169, %170 : vector<8x256xf32>
    %172 = arith.addf %161, %171 : vector<8x256xf32>
    %173 = vector.extract_strided_slice %2 {offsets = [0, 21], sizes = [8, 1], strides = [1, 1]} : vector<8x36xf32> to vector<8x1xf32>
    %174 = vector.extract_strided_slice %166 {offsets = [1, 0], sizes = [1, 256], strides = [1, 1]} : vector<4x256xf32> to vector<1x256xf32>
    %175 = vector.broadcast %173 : vector<8x1xf32> to vector<8x256xf32>
    %176 = vector.broadcast %174 : vector<1x256xf32> to vector<8x256xf32>
    %177 = arith.mulf %175, %176 : vector<8x256xf32>
    %178 = arith.addf %172, %177 : vector<8x256xf32>
    %179 = vector.extract_strided_slice %2 {offsets = [0, 22], sizes = [8, 1], strides = [1, 1]} : vector<8x36xf32> to vector<8x1xf32>
    %180 = vector.extract_strided_slice %166 {offsets = [2, 0], sizes = [1, 256], strides = [1, 1]} : vector<4x256xf32> to vector<1x256xf32>
    %181 = vector.broadcast %179 : vector<8x1xf32> to vector<8x256xf32>
    %182 = vector.broadcast %180 : vector<1x256xf32> to vector<8x256xf32>
    %183 = arith.mulf %181, %182 : vector<8x256xf32>
    %184 = arith.addf %178, %183 : vector<8x256xf32>
    %185 = vector.extract_strided_slice %2 {offsets = [0, 23], sizes = [8, 1], strides = [1, 1]} : vector<8x36xf32> to vector<8x1xf32>
    %186 = vector.extract_strided_slice %166 {offsets = [3, 0], sizes = [1, 256], strides = [1, 1]} : vector<4x256xf32> to vector<1x256xf32>
    %187 = vector.broadcast %185 : vector<8x1xf32> to vector<8x256xf32>
    %188 = vector.broadcast %186 : vector<1x256xf32> to vector<8x256xf32>
    %189 = arith.mulf %187, %188 : vector<8x256xf32>
    %190 = arith.addf %184, %189 : vector<8x256xf32>
    %191 = vector.extract_strided_slice %1 {offsets = [0, 32], sizes = [4, 256], strides = [1, 1]} : vector<4x290xf32> to vector<4x256xf32>
    %cst_12 = arith.constant 0.000000e+00 : f32
    %192 = vector.shape_cast %21 : vector<1x256xi1> to vector<1x256xi1>
    %193 = vector.broadcast %192 : vector<1x256xi1> to vector<4x256xi1>
    %194 = vector.broadcast %cst_12 : f32 to vector<4x256xf32>
    %195 = arith.select %193, %191, %194 : vector<4x256xi1>, vector<4x256xf32>
    %196 = vector.extract_strided_slice %2 {offsets = [0, 24], sizes = [8, 1], strides = [1, 1]} : vector<8x36xf32> to vector<8x1xf32>
    %197 = vector.extract_strided_slice %195 {offsets = [0, 0], sizes = [1, 256], strides = [1, 1]} : vector<4x256xf32> to vector<1x256xf32>
    %198 = vector.broadcast %196 : vector<8x1xf32> to vector<8x256xf32>
    %199 = vector.broadcast %197 : vector<1x256xf32> to vector<8x256xf32>
    %200 = arith.mulf %198, %199 : vector<8x256xf32>
    %201 = arith.addf %190, %200 : vector<8x256xf32>
    %202 = vector.extract_strided_slice %2 {offsets = [0, 25], sizes = [8, 1], strides = [1, 1]} : vector<8x36xf32> to vector<8x1xf32>
    %203 = vector.extract_strided_slice %195 {offsets = [1, 0], sizes = [1, 256], strides = [1, 1]} : vector<4x256xf32> to vector<1x256xf32>
    %204 = vector.broadcast %202 : vector<8x1xf32> to vector<8x256xf32>
    %205 = vector.broadcast %203 : vector<1x256xf32> to vector<8x256xf32>
    %206 = arith.mulf %204, %205 : vector<8x256xf32>
    %207 = arith.addf %201, %206 : vector<8x256xf32>
    %208 = vector.extract_strided_slice %2 {offsets = [0, 26], sizes = [8, 1], strides = [1, 1]} : vector<8x36xf32> to vector<8x1xf32>
    %209 = vector.extract_strided_slice %195 {offsets = [2, 0], sizes = [1, 256], strides = [1, 1]} : vector<4x256xf32> to vector<1x256xf32>
    %210 = vector.broadcast %208 : vector<8x1xf32> to vector<8x256xf32>
    %211 = vector.broadcast %209 : vector<1x256xf32> to vector<8x256xf32>
    %212 = arith.mulf %210, %211 : vector<8x256xf32>
    %213 = arith.addf %207, %212 : vector<8x256xf32>
    %214 = vector.extract_strided_slice %2 {offsets = [0, 27], sizes = [8, 1], strides = [1, 1]} : vector<8x36xf32> to vector<8x1xf32>
    %215 = vector.extract_strided_slice %195 {offsets = [3, 0], sizes = [1, 256], strides = [1, 1]} : vector<4x256xf32> to vector<1x256xf32>
    %216 = vector.broadcast %214 : vector<8x1xf32> to vector<8x256xf32>
    %217 = vector.broadcast %215 : vector<1x256xf32> to vector<8x256xf32>
    %218 = arith.mulf %216, %217 : vector<8x256xf32>
    %219 = arith.addf %213, %218 : vector<8x256xf32>
    %220 = vector.extract_strided_slice %1 {offsets = [0, 33], sizes = [4, 256], strides = [1, 1]} : vector<4x290xf32> to vector<4x256xf32>
    %221 = vector.extract_strided_slice %2 {offsets = [0, 28], sizes = [8, 1], strides = [1, 1]} : vector<8x36xf32> to vector<8x1xf32>
    %222 = vector.extract_strided_slice %220 {offsets = [0, 0], sizes = [1, 256], strides = [1, 1]} : vector<4x256xf32> to vector<1x256xf32>
    %223 = vector.broadcast %221 : vector<8x1xf32> to vector<8x256xf32>
    %224 = vector.broadcast %222 : vector<1x256xf32> to vector<8x256xf32>
    %225 = arith.mulf %223, %224 : vector<8x256xf32>
    %226 = arith.addf %219, %225 : vector<8x256xf32>
    %227 = vector.extract_strided_slice %2 {offsets = [0, 29], sizes = [8, 1], strides = [1, 1]} : vector<8x36xf32> to vector<8x1xf32>
    %228 = vector.extract_strided_slice %220 {offsets = [1, 0], sizes = [1, 256], strides = [1, 1]} : vector<4x256xf32> to vector<1x256xf32>
    %229 = vector.broadcast %227 : vector<8x1xf32> to vector<8x256xf32>
    %230 = vector.broadcast %228 : vector<1x256xf32> to vector<8x256xf32>
    %231 = arith.mulf %229, %230 : vector<8x256xf32>
    %232 = arith.addf %226, %231 : vector<8x256xf32>
    %233 = vector.extract_strided_slice %2 {offsets = [0, 30], sizes = [8, 1], strides = [1, 1]} : vector<8x36xf32> to vector<8x1xf32>
    %234 = vector.extract_strided_slice %220 {offsets = [2, 0], sizes = [1, 256], strides = [1, 1]} : vector<4x256xf32> to vector<1x256xf32>
    %235 = vector.broadcast %233 : vector<8x1xf32> to vector<8x256xf32>
    %236 = vector.broadcast %234 : vector<1x256xf32> to vector<8x256xf32>
    %237 = arith.mulf %235, %236 : vector<8x256xf32>
    %238 = arith.addf %232, %237 : vector<8x256xf32>
    %239 = vector.extract_strided_slice %2 {offsets = [0, 31], sizes = [8, 1], strides = [1, 1]} : vector<8x36xf32> to vector<8x1xf32>
    %240 = vector.extract_strided_slice %220 {offsets = [3, 0], sizes = [1, 256], strides = [1, 1]} : vector<4x256xf32> to vector<1x256xf32>
    %241 = vector.broadcast %239 : vector<8x1xf32> to vector<8x256xf32>
    %242 = vector.broadcast %240 : vector<1x256xf32> to vector<8x256xf32>
    %243 = arith.mulf %241, %242 : vector<8x256xf32>
    %244 = arith.addf %238, %243 : vector<8x256xf32>
    %245 = vector.extract_strided_slice %1 {offsets = [0, 34], sizes = [4, 256], strides = [1, 1]} : vector<4x290xf32> to vector<4x256xf32>
    %cst_13 = arith.constant 0.000000e+00 : f32
    %246 = vector.shape_cast %23 : vector<1x256xi1> to vector<1x256xi1>
    %247 = vector.broadcast %246 : vector<1x256xi1> to vector<4x256xi1>
    %248 = vector.broadcast %cst_13 : f32 to vector<4x256xf32>
    %249 = arith.select %247, %245, %248 : vector<4x256xi1>, vector<4x256xf32>
    %250 = vector.extract_strided_slice %2 {offsets = [0, 32], sizes = [8, 1], strides = [1, 1]} : vector<8x36xf32> to vector<8x1xf32>
    %251 = vector.extract_strided_slice %249 {offsets = [0, 0], sizes = [1, 256], strides = [1, 1]} : vector<4x256xf32> to vector<1x256xf32>
    %252 = vector.broadcast %250 : vector<8x1xf32> to vector<8x256xf32>
    %253 = vector.broadcast %251 : vector<1x256xf32> to vector<8x256xf32>
    %254 = arith.mulf %252, %253 : vector<8x256xf32>
    %255 = arith.addf %244, %254 : vector<8x256xf32>
    %256 = vector.extract_strided_slice %2 {offsets = [0, 33], sizes = [8, 1], strides = [1, 1]} : vector<8x36xf32> to vector<8x1xf32>
    %257 = vector.extract_strided_slice %249 {offsets = [1, 0], sizes = [1, 256], strides = [1, 1]} : vector<4x256xf32> to vector<1x256xf32>
    %258 = vector.broadcast %256 : vector<8x1xf32> to vector<8x256xf32>
    %259 = vector.broadcast %257 : vector<1x256xf32> to vector<8x256xf32>
    %260 = arith.mulf %258, %259 : vector<8x256xf32>
    %261 = arith.addf %255, %260 : vector<8x256xf32>
    %262 = vector.extract_strided_slice %2 {offsets = [0, 34], sizes = [8, 1], strides = [1, 1]} : vector<8x36xf32> to vector<8x1xf32>
    %263 = vector.extract_strided_slice %249 {offsets = [2, 0], sizes = [1, 256], strides = [1, 1]} : vector<4x256xf32> to vector<1x256xf32>
    %264 = vector.broadcast %262 : vector<8x1xf32> to vector<8x256xf32>
    %265 = vector.broadcast %263 : vector<1x256xf32> to vector<8x256xf32>
    %266 = arith.mulf %264, %265 : vector<8x256xf32>
    %267 = arith.addf %261, %266 : vector<8x256xf32>
    %268 = vector.extract_strided_slice %2 {offsets = [0, 35], sizes = [8, 1], strides = [1, 1]} : vector<8x36xf32> to vector<8x1xf32>
    %269 = vector.extract_strided_slice %249 {offsets = [3, 0], sizes = [1, 256], strides = [1, 1]} : vector<4x256xf32> to vector<1x256xf32>
    %270 = vector.broadcast %268 : vector<8x1xf32> to vector<8x256xf32>
    %271 = vector.broadcast %269 : vector<1x256xf32> to vector<8x256xf32>
    %272 = arith.mulf %270, %271 : vector<8x256xf32>
    %273 = arith.addf %267, %272 : vector<8x256xf32>
    %c0_14 = arith.constant 0 : index
    %c0_15 = arith.constant 0 : index
    %274 = vector.load %arg3[%c0_14, %c0_15] : memref<8x1xf32, #tpu.memory_space<vmem>>, vector<8x1xf32>
    %275 = vector.broadcast %274 : vector<8x1xf32> to vector<8x256xf32>
    %276 = arith.addf %273, %275 : vector<8x256xf32>
    %cst_16 = arith.constant 0.000000e+00 : f32
    %277 = vector.broadcast %cst_16 : f32 to vector<8x256xf32>
    %278 = arith.maximumf %276, %277 : vector<8x256xf32>
    %c0_17 = arith.constant 0 : index
    %c0_18 = arith.constant 0 : index
    %c0_19 = arith.constant 0 : index
    %279 = vector.load %arg4[%c0_17, %c0_18, %c0_19] : memref<1x12x256xf32, #tpu.memory_space<vmem>>, vector<1x4x256xf32>
    %280 = vector.shape_cast %279 : vector<1x4x256xf32> to vector<4x256xf32>
    %281 = vector.shape_cast %24 : vector<4x256xf32> to vector<1x4x256xf32>
    tpu.vector_store %arg4[%c0_17, %c0_18, %c0_19], %281 {strides = array<i32>} : memref<1x12x256xf32, #tpu.memory_space<vmem>>, vector<1x4x256xf32>,
    %c0_20 = arith.constant 0 : index
    %c4 = arith.constant 4 : index
    %c0_21 = arith.constant 0 : index
    %282 = vector.load %arg4[%c0_20, %c4, %c0_21] : memref<1x12x256xf32, #tpu.memory_space<vmem>>, vector<1x8x256xf32>
    %283 = vector.shape_cast %282 : vector<1x8x256xf32> to vector<8x256xf32>
    %284 = vector.shape_cast %278 : vector<8x256xf32> to vector<1x8x256xf32>
    tpu.vector_store %arg4[%c0_20, %c4, %c0_21], %284 {strides = array<i32>} : memref<1x12x256xf32, #tpu.memory_space<vmem>>, vector<1x8x256xf32>,
    return
  }
  func.func @transform_0(%arg0: i32) -> (i32, i32, i32) {
    %c0_i32 = arith.constant 0 : i32
    %c0_i32_0 = arith.constant 0 : i32
    %c0_i32_1 = arith.constant 0 : i32
    return %arg0, %c0_i32, %c0_i32_0 : i32, i32, i32
  }
  func.func @transform_1(%arg0: i32) -> (i32, i32) {
    %c0_i32 = arith.constant 0 : i32
    %c0_i32_0 = arith.constant 0 : i32
    %c0_i32_1 = arith.constant 0 : i32
    return %c0_i32, %c0_i32_0 : i32, i32
  }
  func.func @transform_2(%arg0: i32) -> (i32, i32) {
    %c0_i32 = arith.constant 0 : i32
    %c0_i32_0 = arith.constant 0 : i32
    %c0_i32_1 = arith.constant 0 : i32
    return %c0_i32, %c0_i32_0 : i32, i32
  }
  func.func @transform_3(%arg0: i32) -> (i32, i32, i32) {
    %c0_i32 = arith.constant 0 : i32
    %c0_i32_0 = arith.constant 0 : i32
    %c0_i32_1 = arith.constant 0 : i32
    return %arg0, %c0_i32, %c0_i32_0 : i32, i32, i32
  }
}

</mosaic_0001>

<llo_original>
// kernel: dense_layer.1
$region0: #{dense_layer.1}
  #allocation0 [shape = 'u32[]', space=smem, size = 0x4, offset = 0x4, fixed_abs, tag = 'smem constant byte address 0x4 - core index']
  #allocation1 [shape = 'u32[72,128]{1,0:T(1,128)}', space=vmem, size = 0x9000, scoped, tag = 'internal scratch']
  %s0 = inlined_call_operand.vmem [shape: f32[2,4,290], index: 0, kind: input, shape index: {}]
  %s1 = inlined_call_operand.vmem [shape: f32[8,36], index: 1, kind: input, shape index: {}]
  %s2 = inlined_call_operand.vmem [shape: f32[8,1], index: 2, kind: input, shape index: {}]
  %s3 = inlined_call_operand.vmem [shape: f32[2,12,256], index: 3, kind: output, shape index: {}]
  %s4 = sld [smem:[#allocation0]]
  $region45: #{dense_layer.1} parent=0
    _
  %s6 = ssub.s32 1, %s4
  %s7 = scalar_select 0, %s6, %s4
  loop: start=0, step=1, limit=4
  $region2: #{dense_layer.1} parent=0 // loop_pre_header
    _
  $region3: #{dense_layer.1} parent=0 // loop_header
    %s9 = sphi 0, %s13
    %p10 = scmp.ge.s32.totalorder %s9, 4
    %s19 = sphi 0, %s21
    %s22 = sphi 0, %s19
    %s23 = sphi 0, %s22
    %s39 = sphi 0, %s23
    %s43 = sphi 0, %s43
    %s45 = sphi 0, %s43
    %s46 = sphi 0, %s45
    %s60 = sphi 0, %s46
    %s64 = sphi 0, %s64
    %s66 = sphi 0, %s64
    %s67 = sphi 0, %s66
    %s81 = sphi 0, %s67
    %s87 = sphi 0, %s89
    %s90 = sphi 0, %s87
    %s91 = sphi 0, %s90
    %s107 = sphi 0, %s91
  $region4: #{dense_layer.1} parent=0 // loop_header_branch
    %12 = sbr.rel (%p10) target = $region8
  $region5: #{dense_layer.1} parent=0 // loop_body
    %s14 = ssub.s32 %s9, 1
    %s15 = ssub.s32 %s9, 2
    %s16 = sadd.s32 %s9, 1
    %s17 = ssub.s32 %s9, %s16
    %p18 = scmp.eq.s32.totalorder %s17, 0
    %s20 = sadd.s32 %s19, 1
    %s21 = scalar_select %p18, %s19, %s20
    %p24 = pneg %p18
    %p25 = scmp.eq.s32.totalorder %s9, 1
    %p26 = por %p24, %p25
    %p27 = scmp.ne.s32.totalorder %s19, %s22
    %p28 = scmp.eq.s32.totalorder %s9, 0
    %p29 = por %p27, %p28
    %p30 = scmp.ne.s32.totalorder %s19, %s22
    %p31 = scmp.eq.s32.totalorder %s14, 1
    %p32 = por %p30, %p31
    %p33 = scmp.ne.s32.totalorder %s22, %s23
    %p34 = scmp.eq.s32.totalorder %s14, 0
    %p35 = por %p33, %p34
    %p36 = scmp.ne.s32.totalorder %s22, %s23
    %p37 = scmp.eq.s32.totalorder %s15, 1
    %p38 = por %p36, %p37
    %p40 = scmp.ne.s32.totalorder %s23, %s39
    %p41 = scmp.eq.s32.totalorder %s15, 0
    %p42 = por %p40, %p41
    %s44 = sadd.s32 %s43, 1
    %p47 = scmp.eq.s32.totalorder %s9, 1
    %p48 = scmp.ne.s32.totalorder %s43, %s45
    %p49 = scmp.eq.s32.totalorder %s9, 0
    %p50 = por %p48, %p49
    %p51 = scmp.ne.s32.totalorder %s43, %s45
    %p52 = scmp.eq.s32.totalorder %s14, 1
    %p53 = por %p51, %p52
    %p54 = scmp.ne.s32.totalorder %s45, %s46
    %p55 = scmp.eq.s32.totalorder %s14, 0
    %p56 = por %p54, %p55
    %p57 = scmp.ne.s32.totalorder %s45, %s46
    %p58 = scmp.eq.s32.totalorder %s15, 1
    %p59 = por %p57, %p58
    %p61 = scmp.ne.s32.totalorder %s46, %s60
    %p62 = scmp.eq.s32.totalorder %s15, 0
    %p63 = por %p61, %p62
    %s65 = sadd.s32 %s64, 1
    %p68 = scmp.eq.s32.totalorder %s9, 1
    %p69 = scmp.ne.s32.totalorder %s64, %s66
    %p70 = scmp.eq.s32.totalorder %s9, 0
    %p71 = por %p69, %p70
    %p72 = scmp.ne.s32.totalorder %s64, %s66
    %p73 = scmp.eq.s32.totalorder %s14, 1
    %p74 = por %p72, %p73
    %p75 = scmp.ne.s32.totalorder %s66, %s67
    %p76 = scmp.eq.s32.totalorder %s14, 0
    %p77 = por %p75, %p76
    %p78 = scmp.ne.s32.totalorder %s66, %s67
    %p79 = scmp.eq.s32.totalorder %s15, 1
    %p80 = por %p78, %p79
    %p82 = scmp.ne.s32.totalorder %s67, %s81
    %p83 = scmp.eq.s32.totalorder %s15, 0
    %p84 = por %p82, %p83
    %s85 = ssub.s32 %s9, %s16
    %p86 = scmp.eq.s32.totalorder %s85, 0
    %s88 = sadd.s32 %s87, 1
    %s89 = scalar_select %p86, %s87, %s88
    %p92 = pneg %p86
    %p93 = scmp.eq.s32.totalorder %s9, 1
    %p94 = por %p92, %p93
    %p95 = scmp.ne.s32.totalorder %s87, %s90
    %p96 = scmp.eq.s32.totalorder %s9, 0
    %p97 = por %p95, %p96
    %p98 = scmp.ne.s32.totalorder %s87, %s90
    %p99 = scmp.eq.s32.totalorder %s14, 1
    %p100 = por %p98, %p99
    %p101 = scmp.ne.s32.totalorder %s90, %s91
    %p102 = scmp.eq.s32.totalorder %s14, 0
    %p103 = por %p101, %p102
    %p104 = scmp.ne.s32.totalorder %s90, %s91
    %p105 = scmp.eq.s32.totalorder %s15, 1
    %p106 = por %p104, %p105
    %p108 = scmp.ne.s32.totalorder %s91, %s107
    %p109 = scmp.eq.s32.totalorder %s15, 0
    %p110 = por %p108, %p109
    %p111 = scmp.le.s32.totalorder 1, %s9
    %p112 = scmp.lt.s32.totalorder %s9, 3
    %p113 = pnand %p111, %p112
    %p114 = pneg %p113
    // Predicated region
    $region9: #{dense_layer.1} parent=5 // pred_check
      _
    $region10: #{dense_layer.1} parent=5 // pred_check_branch
      %116 = sbr.rel (%p113) target = $region12
    $region11: #{dense_layer.1} parent=5 // pred_region
      %s117 = ssub.s32 %s9, 1
      // Predicated region
      $region13: #{dense_layer.1} parent=11 // pred_check
        %p118 = pneg %p56
      $region14: #{dense_layer.1} parent=11 // pred_check_branch
        %120 = sbr.rel (%p118) target = $region16
      $region15: #{dense_layer.1} parent=11 // pred_region
        _
      $region16: #{dense_layer.1} parent=11 // pred_fallthru
        _
      // Predicated region
      $region17: #{dense_layer.1} parent=11 // pred_check
        %p121 = pneg %p77
      $region18: #{dense_layer.1} parent=11 // pred_check_branch
        %123 = sbr.rel (%p121) target = $region20
      $region19: #{dense_layer.1} parent=11 // pred_region
        _
      $region20: #{dense_layer.1} parent=11 // pred_fallthru
        _
    $region12: #{dense_layer.1} parent=5 // pred_fallthru
      _
    %p124 = scmp.lt.s32.totalorder %s9, 2
    // Predicated region
    $region21: #{dense_layer.1} parent=5 // pred_check
      %p125 = pneg %p124
    $region22: #{dense_layer.1} parent=5 // pred_check_branch
      %127 = sbr.rel (%p125) target = $region24
    $region23: #{dense_layer.1} parent=5 // pred_region
      // Predicated region
      $region25: #{dense_layer.1} parent=23 // pred_check
        %p128 = pneg %p29
      $region26: #{dense_layer.1} parent=23 // pred_check_branch
        %130 = sbr.rel (%p128) target = $region28
      $region27: #{dense_layer.1} parent=23 // pred_region
        %p131 = scmp.lt.s32.totalorder %s9, 1
        %s132 = scalar_select %p131, %s9, 1
        %s133 = smul.addr %s132, 3
        %s134 = smul.addr %s133, 4
        %s135 = scalar_lea.vmem %s0, %s134
      $region28: #{dense_layer.1} parent=23 // pred_fallthru
        _
    $region24: #{dense_layer.1} parent=5 // pred_fallthru
      _
    %p136 = scmp.le.s32.totalorder 1, %s9
    %p137 = scmp.lt.s32.totalorder %s9, 3
    %p138 = pnand %p136, %p137
    %p139 = pneg %p138
    // Predicated region
    $region29: #{dense_layer.1} parent=5 // pred_check
      _
    $region30: #{dense_layer.1} parent=5 // pred_check_branch
      %141 = sbr.rel (%p138) target = $region32
    $region31: #{dense_layer.1} parent=5 // pred_region
      %s142 = ssub.s32 %s9, 1
      %p143 = scmp.lt.s32.totalorder %s14, 1
      %s144 = scalar_select %p143, %s14, 1
      %s145 = smul.addr %s144, 3
      %s146 = smul.addr %s145, 4
      %s147 = scalar_lea.vmem %s0, %s146
      %p148 = pneg %p35
      %p149 = pneg %p32
      %p150 = pneg %p56
      %p151 = pneg %p53
      %p152 = pneg %p77
      %p153 = pneg %p74
      %p154 = pneg %p103
      %p155 = pneg %p100
      %p156 = scmp.lt.s32.totalorder %s14, 1
      %s157 = scalar_select %p156, %s14, 1
      %s158 = smul.addr %s157, 4
      %s159 = smul.addr %s158, 8
      %s160 = scalar_lea.vmem %s3, %s159
      %p161 = scmp.lt.s32.totalorder %s14, 1
      %s162 = scalar_select %p161, %s14, 1
      %s163 = smul.addr %s162, 3
      %s164 = smul.addr %s163, 4
      %s165 = scalar_lea.vmem %s0, %s164
      %p166 = scmp.lt.s32.totalorder %s14, 1
      %s167 = scalar_select %p166, %s14, 1
      %s168 = smul.addr %s167, 4
      %s169 = smul.addr %s168, 8
      %s170 = scalar_lea.vmem %s3, %s169
      %v171 = vld [vmem:[%s165] sm:$0xff]
      %v172 = vld [vmem:[%s165 + $0x8] sm:$0xf]
      %v173 = vld [vmem:[%s1] sm:$0xff]
      %v174 = vlaneseq
      %v175 = vand.u32 %v174, 127
      %v176 = vadd.s32 %v175, 128
      %vm177 = vcmp.lt.s32.totalorder %v175, 0
      %v178 = vsub.s32 0, %v175
      %v179 = vsel %vm177, %v178, %v175
      %v180 = vshrl.u32 %v179, 4
      %v181 = vand.u32 %v179, 15
      %v182 = vsub.s32 0, %v181
      %v183 = vsel %vm177, %v182, %v181
      %vm184 = vcmp.lt.s32.totalorder %v176, 0
      %v185 = vsub.s32 0, %v176
      %v186 = vsel %vm184, %v185, %v176
      %v187 = vshrl.u32 %v186, 4
      %v188 = vand.u32 %v186, 15
      %v189 = vsub.s32 0, %v188
      %v190 = vsel %vm184, %v189, %v188
      %vm191 = vcmp.ne.s32.totalorder %v183, 0
      %vm192 = vcmp.ne.s32.totalorder %v190, 0
      %vm193 = vcmp.lt.s32.totalorder %v183, 0
      %vm194 = vcmp.lt.s32.totalorder %v190, 0
      %vm195 = vmand %vm193, %vm191
      %vm196 = vmand %vm194, %vm192
      %v197 = vadd.s32 %v183, 16
      %v198 = vadd.s32 %v190, 16
      %v199 = vsel %vm195, %v197, %v183
      %v200 = vsel %vm196, %v198, %v190
      %vm201 = vcmp.ge.s32.totalorder %v199, 1
      %vm202 = vcmp.ge.s32.totalorder %v200, 1
      %vm203 = vcmp.le.s32.totalorder %v199, 14
      %vm204 = vcmp.le.s32.totalorder %v200, 14
      %v205 = vsel %vm201, 1, 0
      %v206 = vsel %vm202, 1, 0
      %vm207 = vcmp.eq.s32.totalorder %v205, 1
      %vm208 = vcmp.eq.s32.totalorder %v206, 1
      %210 = vst [vmem:[#allocation1] ss:$2 sm:$0xff] %v171
      %v211 = vld.sshfl [vmem:[#allocation1] sm:$0xff pattern:$0x75316420]
      %v212 = vld.sshfl [vmem:[#allocation1 + $0x8] sm:$0xff pattern:$0x75316420]
      %v215 = vsel %vm207, %v211, 0.0
      %v216 = vsel %vm208, %v212, 0.0
      %218 = vset.pattern.permute.xlu0 0
      %219 = vperm.xlu0 %218, %v173
      %v220 = vpop.permute.xlu0 %219
      %v222 = vperm.slane %v215, 0
      %v223 = vperm.slane %v216, 0
      %v224 = vmul.f32 %v220, %v222
      %v225 = vmul.f32 %v220, %v223
      %v226 = vadd.f32 %v224, 0.0
      %v227 = vadd.f32 %v225, 0.0
      %228 = vset.pattern.permute.xlu0 1
      %229 = vperm.xlu0 %228, %v173
      %v230 = vpop.permute.xlu0 %229
      %v232 = vperm.slane %v215, 1
      %v233 = vperm.slane %v216, 1
      %v234 = vmul.f32 %v230, %v232
      %v235 = vmul.f32 %v230, %v233
      %v236 = vadd.f32 %v226, %v234
      %v237 = vadd.f32 %v227, %v235
      %238 = vset.pattern.permute.xlu0 2
      %239 = vperm.xlu0 %238, %v173
      %v240 = vpop.permute.xlu0 %239
      %v242 = vperm.slane %v215, 2
      %v243 = vperm.slane %v216, 2
      %v244 = vmul.f32 %v240, %v242
      %v245 = vmul.f32 %v240, %v243
      %v246 = vadd.f32 %v236, %v244
      %v247 = vadd.f32 %v237, %v245
      %248 = vset.pattern.permute.xlu0 3
      %249 = vperm.xlu0 %248, %v173
      %v250 = vpop.permute.xlu0 %249
      %v252 = vperm.slane %v215, 3
      %v253 = vperm.slane %v216, 3
      %v254 = vmul.f32 %v250, %v252
      %v255 = vmul.f32 %v250, %v253
      %v256 = vadd.f32 %v246, %v254
      %v257 = vadd.f32 %v247, %v255
      %258 = vset.pattern.permute.xlu0 4
      %259 = vperm.xlu0 %258, %v173
      %v260 = vpop.permute.xlu0 %259
      %v263 = vperm.slane %v171, 0
      %v264 = vperm.slane %v171, 4
      %v265 = vperm.slane %v172, 0
      %v269 = vperm.slane %v263, 0
      %v270 = vperm.slane %v264, 0
      %v271 = vperm.slane %v265, 0
      %v272 = vmul.f32 %v260, %v269
      %v273 = vmul.f32 %v260, %v270
      %v274 = vmul.f32 %v260, %v271
      %278 = vrot.lane.b32.xlu0 %v272, 127
      %v279 = vpop.permute.xlu0 %278
      %280 = vrot.lane.b32.xlu0 %v273, 127
      %v281 = vpop.permute.xlu0 %280
      %282 = vrot.lane.b32.xlu0 %v274, 127
      %v283 = vpop.permute.xlu0 %282
      %vm284 = vcmask 1039360
      %v285 = vsel %vm284, %v279, %v281
      %v286 = vsel %vm284, %v281, %v283
      %v289 = vadd.f32 %v256, %v285
      %v290 = vadd.f32 %v257, %v286
      %291 = vset.pattern.permute.xlu0 5
      %292 = vperm.xlu0 %291, %v173
      %v293 = vpop.permute.xlu0 %292
      %v295 = vperm.slane %v171, 1
      %v296 = vperm.slane %v171, 5
      %v297 = vperm.slane %v172, 1
      %v301 = vperm.slane %v295, 1
      %v302 = vperm.slane %v296, 1
      %v303 = vperm.slane %v297, 1
      %v304 = vmul.f32 %v293, %v301
      %v305 = vmul.f32 %v293, %v302
      %v306 = vmul.f32 %v293, %v303
      %310 = vrot.lane.b32.xlu0 %v304, 127
      %v311 = vpop.permute.xlu0 %310
      %312 = vrot.lane.b32.xlu0 %v305, 127
      %v313 = vpop.permute.xlu0 %312
      %314 = vrot.lane.b32.xlu0 %v306, 127
      %v315 = vpop.permute.xlu0 %314
      %v316 = vsel %vm284, %v311, %v313
      %v317 = vsel %vm284, %v313, %v315
      %v320 = vadd.f32 %v289, %v316
      %v321 = vadd.f32 %v290, %v317
      %322 = vset.pattern.permute.xlu0 6
      %323 = vperm.xlu0 %322, %v173
      %v324 = vpop.permute.xlu0 %323
      %v326 = vperm.slane %v171, 2
      %v327 = vperm.slane %v171, 6
      %v328 = vperm.slane %v172, 2
      %v332 = vperm.slane %v326, 2
      %v333 = vperm.slane %v327, 2
      %v334 = vperm.slane %v328, 2
      %v335 = vmul.f32 %v324, %v332
      %v336 = vmul.f32 %v324, %v333
      %v337 = vmul.f32 %v324, %v334
      %341 = vrot.lane.b32.xlu0 %v335, 127
      %v342 = vpop.permute.xlu0 %341
      %343 = vrot.lane.b32.xlu0 %v336, 127
      %v344 = vpop.permute.xlu0 %343
      %345 = vrot.lane.b32.xlu0 %v337, 127
      %v346 = vpop.permute.xlu0 %345
      %v347 = vsel %vm284, %v342, %v344
      %v348 = vsel %vm284, %v344, %v346
      %v351 = vadd.f32 %v320, %v347
      %v352 = vadd.f32 %v321, %v348
      %353 = vset.pattern.permute.xlu0 7
      %354 = vperm.xlu0 %353, %v173
      %v355 = vpop.permute.xlu0 %354
      %v357 = vperm.slane %v171, 3
      %v358 = vperm.slane %v171, 7
      %v359 = vperm.slane %v172, 3
      %v363 = vperm.slane %v357, 3
      %v364 = vperm.slane %v358, 3
      %v365 = vperm.slane %v359, 3
      %v366 = vmul.f32 %v355, %v363
      %v367 = vmul.f32 %v355, %v364
      %v368 = vmul.f32 %v355, %v365
      %372 = vrot.lane.b32.xlu0 %v366, 127
      %v373 = vpop.permute.xlu0 %372
      %374 = vrot.lane.b32.xlu0 %v367, 127
      %v375 = vpop.permute.xlu0 %374
      %376 = vrot.lane.b32.xlu0 %v368, 127
      %v377 = vpop.permute.xlu0 %376
      %v378 = vsel %vm284, %v373, %v375
      %v379 = vsel %vm284, %v375, %v377
      %v382 = vadd.f32 %v351, %v378
      %v383 = vadd.f32 %v352, %v379
      %v384 = vsel %vm203, 1, 0
      %v385 = vsel %vm204, 1, 0
      %vm386 = vcmp.eq.s32.totalorder %v384, 1
      %vm387 = vcmp.eq.s32.totalorder %v385, 1
      %388 = vst [vmem:[#allocation1] ss:$2 sm:$0xff] %v171
      %s389 = scalar_lea.vmem [#allocation1], 16
      %390 = vst [vmem:[%s389] ss:$2 sm:$0xff] %v172
      %v391 = vld.sshfl [vmem:[#allocation1] sm:$0xff pattern:$0x75316420]
      %v392 = vld.sshfl [vmem:[#allocation1 + $0x8] sm:$0xff pattern:$0x75316420]
      %v393 = vld.sshfl [vmem:[#allocation1 + $0x10] sm:$0xff pattern:$0x75316420]
      %394 = vrot.lane.b32.xlu0 %v391, 126
      %v395 = vpop.permute.xlu0 %394
      %396 = vrot.lane.b32.xlu0 %v392, 126
      %v397 = vpop.permute.xlu0 %396
      %398 = vrot.lane.b32.xlu0 %v393, 126
      %v399 = vpop.permute.xlu0 %398
      %vm400 = vcmask 1031168
      %v401 = vsel %vm400, %v395, %v397
      %v402 = vsel %vm400, %v397, %v399
      %v405 = vsel %vm386, %v401, 0.0
      %v406 = vsel %vm387, %v402, 0.0
      %407 = vset.pattern.permute.xlu0 8
      %408 = vperm.xlu0 %407, %v173
      %v409 = vpop.permute.xlu0 %408
      %v411 = vperm.slane %v405, 0
      %v412 = vperm.slane %v406, 0
      %v413 = vmul.f32 %v409, %v411
      %v414 = vmul.f32 %v409, %v412
      %v415 = vadd.f32 %v382, %v413
      %v416 = vadd.f32 %v383, %v414
      %417 = vset.pattern.permute.xlu0 9
      %418 = vperm.xlu0 %417, %v173
      %v419 = vpop.permute.xlu0 %418
      %v421 = vperm.slane %v405, 1
      %v422 = vperm.slane %v406, 1
      %v423 = vmul.f32 %v419, %v421
      %v424 = vmul.f32 %v419, %v422
      %v425 = vadd.f32 %v415, %v423
      %v426 = vadd.f32 %v416, %v424
      %427 = vset.pattern.permute.xlu0 10
      %428 = vperm.xlu0 %427, %v173
      %v429 = vpop.permute.xlu0 %428
      %v431 = vperm.slane %v405, 2
      %v432 = vperm.slane %v406, 2
      %v433 = vmul.f32 %v429, %v431
      %v434 = vmul.f32 %v429, %v432
      %v435 = vadd.f32 %v425, %v433
      %v436 = vadd.f32 %v426, %v434
      %437 = vset.pattern.permute.xlu0 11
      %438 = vperm.xlu0 %437, %v173
      %v439 = vpop.permute.xlu0 %438
      %v441 = vperm.slane %v405, 3
      %v442 = vperm.slane %v406, 3
      %v443 = vmul.f32 %v439, %v441
      %v444 = vmul.f32 %v439, %v442
      %v445 = vadd.f32 %v435, %v443
      %v446 = vadd.f32 %v436, %v444
      %447 = vst [vmem:[#allocation1] ss:$2 sm:$0xff] %v171
      %s448 = scalar_lea.vmem [#allocation1], 16
      %449 = vst [vmem:[%s448] ss:$2 sm:$0xff] %v172
      %v450 = vld.sshfl [vmem:[#allocation1] sm:$0xff pattern:$0x75316420]
      %v451 = vld.sshfl [vmem:[#allocation1 + $0x8] sm:$0xff pattern:$0x75316420]
      %v452 = vld.sshfl [vmem:[#allocation1 + $0x10] sm:$0xff pattern:$0x75316420]
      %453 = vrot.lane.b32.xlu0 %v450, 112
      %v454 = vpop.permute.xlu0 %453
      %455 = vrot.lane.b32.xlu0 %v451, 112
      %v456 = vpop.permute.xlu0 %455
      %457 = vrot.lane.b32.xlu0 %v452, 112
      %v458 = vpop.permute.xlu0 %457
      %vm459 = vcmask 916480
      %v460 = vsel %vm459, %v454, %v456
      %v461 = vsel %vm459, %v456, %v458
      %v464 = vsel %vm207, %v460, 0.0
      %v465 = vsel %vm208, %v461, 0.0
      %466 = vset.pattern.permute.xlu0 12
      %467 = vperm.xlu0 %466, %v173
      %v468 = vpop.permute.xlu0 %467
      %v470 = vperm.slane %v464, 0
      %v471 = vperm.slane %v465, 0
      %v472 = vmul.f32 %v468, %v470
      %v473 = vmul.f32 %v468, %v471
      %v474 = vadd.f32 %v445, %v472
      %v475 = vadd.f32 %v446, %v473
      %476 = vset.pattern.permute.xlu0 13
      %477 = vperm.xlu0 %476, %v173
      %v478 = vpop.permute.xlu0 %477
      %v480 = vperm.slane %v464, 1
      %v481 = vperm.slane %v465, 1
      %v482 = vmul.f32 %v478, %v480
      %v483 = vmul.f32 %v478, %v481
      %v484 = vadd.f32 %v474, %v482
      %v485 = vadd.f32 %v475, %v483
      %486 = vset.pattern.permute.xlu0 14
      %487 = vperm.xlu0 %486, %v173
      %v488 = vpop.permute.xlu0 %487
      %v490 = vperm.slane %v464, 2
      %v491 = vperm.slane %v465, 2
      %v492 = vmul.f32 %v488, %v490
      %v493 = vmul.f32 %v488, %v491
      %v494 = vadd.f32 %v484, %v492
      %v495 = vadd.f32 %v485, %v493
      %496 = vset.pattern.permute.xlu0 15
      %497 = vperm.xlu0 %496, %v173
      %v498 = vpop.permute.xlu0 %497
      %v500 = vperm.slane %v464, 3
      %v501 = vperm.slane %v465, 3
      %v502 = vmul.f32 %v498, %v500
      %v503 = vmul.f32 %v498, %v501
      %v504 = vadd.f32 %v494, %v502
      %v505 = vadd.f32 %v495, %v503
      %506 = vset.pattern.permute.xlu0 16
      %507 = vperm.xlu0 %506, %v173
      %v508 = vpop.permute.xlu0 %507
      %v510 = vmul.f32 %v508, %v269
      %v511 = vmul.f32 %v508, %v270
      %v512 = vmul.f32 %v508, %v271
      %516 = vrot.lane.b32.xlu0 %v510, 111
      %v517 = vpop.permute.xlu0 %516
      %518 = vrot.lane.b32.xlu0 %v511, 111
      %v519 = vpop.permute.xlu0 %518
      %520 = vrot.lane.b32.xlu0 %v512, 111
      %v521 = vpop.permute.xlu0 %520
      %vm522 = vcmask 908288
      %v523 = vsel %vm522, %v517, %v519
      %v524 = vsel %vm522, %v519, %v521
      %v527 = vadd.f32 %v504, %v523
      %v528 = vadd.f32 %v505, %v524
      %529 = vset.pattern.permute.xlu0 17
      %530 = vperm.xlu0 %529, %v173
      %v531 = vpop.permute.xlu0 %530
      %v533 = vmul.f32 %v531, %v301
      %v534 = vmul.f32 %v531, %v302
      %v535 = vmul.f32 %v531, %v303
      %539 = vrot.lane.b32.xlu0 %v533, 111
      %v540 = vpop.permute.xlu0 %539
      %541 = vrot.lane.b32.xlu0 %v534, 111
      %v542 = vpop.permute.xlu0 %541
      %543 = vrot.lane.b32.xlu0 %v535, 111
      %v544 = vpop.permute.xlu0 %543
      %v545 = vsel %vm522, %v540, %v542
      %v546 = vsel %vm522, %v542, %v544
      %v549 = vadd.f32 %v527, %v545
      %v550 = vadd.f32 %v528, %v546
      %551 = vset.pattern.permute.xlu0 18
      %552 = vperm.xlu0 %551, %v173
      %v553 = vpop.permute.xlu0 %552
      %v555 = vmul.f32 %v553, %v332
      %v556 = vmul.f32 %v553, %v333
      %v557 = vmul.f32 %v553, %v334
      %561 = vrot.lane.b32.xlu0 %v555, 111
      %v562 = vpop.permute.xlu0 %561
      %563 = vrot.lane.b32.xlu0 %v556, 111
      %v564 = vpop.permute.xlu0 %563
      %565 = vrot.lane.b32.xlu0 %v557, 111
      %v566 = vpop.permute.xlu0 %565
      %v567 = vsel %vm522, %v562, %v564
      %v568 = vsel %vm522, %v564, %v566
      %v571 = vadd.f32 %v549, %v567
      %v572 = vadd.f32 %v550, %v568
      %573 = vset.pattern.permute.xlu0 19
      %574 = vperm.xlu0 %573, %v173
      %v575 = vpop.permute.xlu0 %574
      %v577 = vmul.f32 %v575, %v363
      %v578 = vmul.f32 %v575, %v364
      %v579 = vmul.f32 %v575, %v365
      %583 = vrot.lane.b32.xlu0 %v577, 111
      %v584 = vpop.permute.xlu0 %583
      %585 = vrot.lane.b32.xlu0 %v578, 111
      %v586 = vpop.permute.xlu0 %585
      %587 = vrot.lane.b32.xlu0 %v579, 111
      %v588 = vpop.permute.xlu0 %587
      %v589 = vsel %vm522, %v584, %v586
      %v590 = vsel %vm522, %v586, %v588
      %v593 = vadd.f32 %v571, %v589
      %v594 = vadd.f32 %v572, %v590
      %595 = vst [vmem:[#allocation1] ss:$2 sm:$0xff] %v171
      %s596 = scalar_lea.vmem [#allocation1], 16
      %597 = vst [vmem:[%s596] ss:$2 sm:$0xff] %v172
      %v598 = vld.sshfl [vmem:[#allocation1] sm:$0xff pattern:$0x75316420]
      %v599 = vld.sshfl [vmem:[#allocation1 + $0x8] sm:$0xff pattern:$0x75316420]
      %v600 = vld.sshfl [vmem:[#allocation1 + $0x10] sm:$0xff pattern:$0x75316420]
      %601 = vrot.lane.b32.xlu0 %v598, 110
      %v602 = vpop.permute.xlu0 %601
      %603 = vrot.lane.b32.xlu0 %v599, 110
      %v604 = vpop.permute.xlu0 %603
      %605 = vrot.lane.b32.xlu0 %v600, 110
      %v606 = vpop.permute.xlu0 %605
      %vm607 = vcmask 900096
      %v608 = vsel %vm607, %v602, %v604
      %v609 = vsel %vm607, %v604, %v606
      %v612 = vsel %vm386, %v608, 0.0
      %v613 = vsel %vm387, %v609, 0.0
      %614 = vset.pattern.permute.xlu0 20
      %615 = vperm.xlu0 %614, %v173
      %v616 = vpop.permute.xlu0 %615
      %v618 = vperm.slane %v612, 0
      %v619 = vperm.slane %v613, 0
      %v620 = vmul.f32 %v616, %v618
      %v621 = vmul.f32 %v616, %v619
      %v622 = vadd.f32 %v593, %v620
      %v623 = vadd.f32 %v594, %v621
      %624 = vset.pattern.permute.xlu0 21
      %625 = vperm.xlu0 %624, %v173
      %v626 = vpop.permute.xlu0 %625
      %v628 = vperm.slane %v612, 1
      %v629 = vperm.slane %v613, 1
      %v630 = vmul.f32 %v626, %v628
      %v631 = vmul.f32 %v626, %v629
      %v632 = vadd.f32 %v622, %v630
      %v633 = vadd.f32 %v623, %v631
      %634 = vset.pattern.permute.xlu0 22
      %635 = vperm.xlu0 %634, %v173
      %v636 = vpop.permute.xlu0 %635
      %v638 = vperm.slane %v612, 2
      %v639 = vperm.slane %v613, 2
      %v640 = vmul.f32 %v636, %v638
      %v641 = vmul.f32 %v636, %v639
      %v642 = vadd.f32 %v632, %v640
      %v643 = vadd.f32 %v633, %v641
      %644 = vset.pattern.permute.xlu0 23
      %645 = vperm.xlu0 %644, %v173
      %v646 = vpop.permute.xlu0 %645
      %v648 = vperm.slane %v612, 3
      %v649 = vperm.slane %v613, 3
      %v650 = vmul.f32 %v646, %v648
      %v651 = vmul.f32 %v646, %v649
      %v652 = vadd.f32 %v642, %v650
      %v653 = vadd.f32 %v643, %v651
      %654 = vst [vmem:[#allocation1] ss:$2 sm:$0xff] %v171
      %s655 = scalar_lea.vmem [#allocation1], 16
      %656 = vst [vmem:[%s655] ss:$2 sm:$0xff] %v172
      %v657 = vld.sshfl [vmem:[#allocation1] sm:$0xff pattern:$0x75316420]
      %v658 = vld.sshfl [vmem:[#allocation1 + $0x8] sm:$0xff pattern:$0x75316420]
      %v659 = vld.sshfl [vmem:[#allocation1 + $0x10] sm:$0xff pattern:$0x75316420]
      %660 = vrot.lane.b32.xlu0 %v657, 96
      %v661 = vpop.permute.xlu0 %660
      %662 = vrot.lane.b32.xlu0 %v658, 96
      %v663 = vpop.permute.xlu0 %662
      %664 = vrot.lane.b32.xlu0 %v659, 96
      %v665 = vpop.permute.xlu0 %664
      %vm666 = vcmask 785408
      %v667 = vsel %vm666, %v661, %v663
      %v668 = vsel %vm666, %v663, %v665
      %v671 = vsel %vm207, %v667, 0.0
      %v672 = vsel %vm208, %v668, 0.0
      %673 = vset.pattern.permute.xlu0 24
      %674 = vperm.xlu0 %673, %v173
      %v675 = vpop.permute.xlu0 %674
      %v677 = vperm.slane %v671, 0
      %v678 = vperm.slane %v672, 0
      %v679 = vmul.f32 %v675, %v677
      %v680 = vmul.f32 %v675, %v678
      %v681 = vadd.f32 %v652, %v679
      %v682 = vadd.f32 %v653, %v680
      %683 = vset.pattern.permute.xlu0 25
      %684 = vperm.xlu0 %683, %v173
      %v685 = vpop.permute.xlu0 %684
      %v687 = vperm.slane %v671, 1
      %v688 = vperm.slane %v672, 1
      %v689 = vmul.f32 %v685, %v687
      %v690 = vmul.f32 %v685, %v688
      %v691 = vadd.f32 %v681, %v689
      %v692 = vadd.f32 %v682, %v690
      %693 = vset.pattern.permute.xlu0 26
      %694 = vperm.xlu0 %693, %v173
      %v695 = vpop.permute.xlu0 %694
      %v697 = vperm.slane %v671, 2
      %v698 = vperm.slane %v672, 2
      %v699 = vmul.f32 %v695, %v697
      %v700 = vmul.f32 %v695, %v698
      %v701 = vadd.f32 %v691, %v699
      %v702 = vadd.f32 %v692, %v700
      %703 = vset.pattern.permute.xlu0 27
      %704 = vperm.xlu0 %703, %v173
      %v705 = vpop.permute.xlu0 %704
      %v707 = vperm.slane %v671, 3
      %v708 = vperm.slane %v672, 3
      %v709 = vmul.f32 %v705, %v707
      %v710 = vmul.f32 %v705, %v708
      %v711 = vadd.f32 %v701, %v709
      %v712 = vadd.f32 %v702, %v710
      %713 = vset.pattern.permute.xlu0 28
      %714 = vperm.xlu0 %713, %v173
      %v715 = vpop.permute.xlu0 %714
      %v717 = vmul.f32 %v715, %v269
      %v718 = vmul.f32 %v715, %v270
      %v719 = vmul.f32 %v715, %v271
      %723 = vrot.lane.b32.xlu0 %v717, 95
      %v724 = vpop.permute.xlu0 %723
      %725 = vrot.lane.b32.xlu0 %v718, 95
      %v726 = vpop.permute.xlu0 %725
      %727 = vrot.lane.b32.xlu0 %v719, 95
      %v728 = vpop.permute.xlu0 %727
      %vm729 = vcmask 777216
      %v730 = vsel %vm729, %v724, %v726
      %v731 = vsel %vm729, %v726, %v728
      %v734 = vadd.f32 %v711, %v730
      %v735 = vadd.f32 %v712, %v731
      %736 = vset.pattern.permute.xlu0 29
      %737 = vperm.xlu0 %736, %v173
      %v738 = vpop.permute.xlu0 %737
      %v740 = vmul.f32 %v738, %v301
      %v741 = vmul.f32 %v738, %v302
      %v742 = vmul.f32 %v738, %v303
      %746 = vrot.lane.b32.xlu0 %v740, 95
      %v747 = vpop.permute.xlu0 %746
      %748 = vrot.lane.b32.xlu0 %v741, 95
      %v749 = vpop.permute.xlu0 %748
      %750 = vrot.lane.b32.xlu0 %v742, 95
      %v751 = vpop.permute.xlu0 %750
      %v752 = vsel %vm729, %v747, %v749
      %v753 = vsel %vm729, %v749, %v751
      %v756 = vadd.f32 %v734, %v752
      %v757 = vadd.f32 %v735, %v753
      %758 = vset.pattern.permute.xlu0 30
      %759 = vperm.xlu0 %758, %v173
      %v760 = vpop.permute.xlu0 %759
      %v762 = vmul.f32 %v760, %v332
      %v763 = vmul.f32 %v760, %v333
      %v764 = vmul.f32 %v760, %v334
      %768 = vrot.lane.b32.xlu0 %v762, 95
      %v769 = vpop.permute.xlu0 %768
      %770 = vrot.lane.b32.xlu0 %v763, 95
      %v771 = vpop.permute.xlu0 %770
      %772 = vrot.lane.b32.xlu0 %v764, 95
      %v773 = vpop.permute.xlu0 %772
      %v774 = vsel %vm729, %v769, %v771
      %v775 = vsel %vm729, %v771, %v773
      %v778 = vadd.f32 %v756, %v774
      %v779 = vadd.f32 %v757, %v775
      %780 = vset.pattern.permute.xlu0 31
      %781 = vperm.xlu0 %780, %v173
      %v782 = vpop.permute.xlu0 %781
      %v784 = vmul.f32 %v782, %v363
      %v785 = vmul.f32 %v782, %v364
      %v786 = vmul.f32 %v782, %v365
      %790 = vrot.lane.b32.xlu0 %v784, 95
      %v791 = vpop.permute.xlu0 %790
      %792 = vrot.lane.b32.xlu0 %v785, 95
      %v793 = vpop.permute.xlu0 %792
      %794 = vrot.lane.b32.xlu0 %v786, 95
      %v795 = vpop.permute.xlu0 %794
      %v796 = vsel %vm729, %v791, %v793
      %v797 = vsel %vm729, %v793, %v795
      %v800 = vadd.f32 %v778, %v796
      %v801 = vadd.f32 %v779, %v797
      %802 = vst [vmem:[#allocation1] ss:$2 sm:$0xff] %v171
      %s803 = scalar_lea.vmem [#allocation1], 16
      %804 = vst [vmem:[%s803] ss:$2 sm:$0xff] %v172
      %v805 = vld.sshfl [vmem:[#allocation1] sm:$0xff pattern:$0x75316420]
      %v806 = vld.sshfl [vmem:[#allocation1 + $0x8] sm:$0xff pattern:$0x75316420]
      %v807 = vld.sshfl [vmem:[#allocation1 + $0x10] sm:$0xff pattern:$0x75316420]
      %808 = vrot.lane.b32.xlu0 %v805, 94
      %v809 = vpop.permute.xlu0 %808
      %810 = vrot.lane.b32.xlu0 %v806, 94
      %v811 = vpop.permute.xlu0 %810
      %812 = vrot.lane.b32.xlu0 %v807, 94
      %v813 = vpop.permute.xlu0 %812
      %vm814 = vcmask 769024
      %v815 = vsel %vm814, %v809, %v811
      %v816 = vsel %vm814, %v811, %v813
      %v819 = vsel %vm386, %v815, 0.0
      %v820 = vsel %vm387, %v816, 0.0
      %821 = vset.pattern.permute.xlu0 32
      %822 = vperm.xlu0 %821, %v173
      %v823 = vpop.permute.xlu0 %822
      %v825 = vperm.slane %v819, 0
      %v826 = vperm.slane %v820, 0
      %v827 = vmul.f32 %v823, %v825
      %v828 = vmul.f32 %v823, %v826
      %v829 = vadd.f32 %v800, %v827
      %v830 = vadd.f32 %v801, %v828
      %831 = vset.pattern.permute.xlu0 33
      %832 = vperm.xlu0 %831, %v173
      %v833 = vpop.permute.xlu0 %832
      %v835 = vperm.slane %v819, 1
      %v836 = vperm.slane %v820, 1
      %v837 = vmul.f32 %v833, %v835
      %v838 = vmul.f32 %v833, %v836
      %v839 = vadd.f32 %v829, %v837
      %v840 = vadd.f32 %v830, %v838
      %841 = vset.pattern.permute.xlu0 34
      %842 = vperm.xlu0 %841, %v173
      %v843 = vpop.permute.xlu0 %842
      %v845 = vperm.slane %v819, 2
      %v846 = vperm.slane %v820, 2
      %v847 = vmul.f32 %v843, %v845
      %v848 = vmul.f32 %v843, %v846
      %v849 = vadd.f32 %v839, %v847
      %v850 = vadd.f32 %v840, %v848
      %851 = vset.pattern.permute.xlu0 35
      %852 = vperm.xlu0 %851, %v173
      %v853 = vpop.permute.xlu0 %852
      %v855 = vperm.slane %v819, 3
      %v856 = vperm.slane %v820, 3
      %v857 = vmul.f32 %v853, %v855
      %v858 = vmul.f32 %v853, %v856
      %v859 = vadd.f32 %v849, %v857
      %v860 = vadd.f32 %v850, %v858
      %v861 = vld [vmem:[%s2] sm:$0xff]
      %863 = vset.pattern.permute.xlu0 0
      %864 = vperm.xlu0 %863, %v861
      %v865 = vpop.permute.xlu0 %864
      %v867 = vadd.f32 %v859, %v865
      %v868 = vadd.f32 %v860, %v865
      %v869 = vmax.f32 %v867, 0.0
      %v870 = vmax.f32 %v868, 0.0
      %871 = vst [vmem:[#allocation1] ss:$2 sm:$0xff] %v171
      %s872 = scalar_lea.vmem [#allocation1], 16
      %873 = vst [vmem:[%s872] ss:$2 sm:$0xff] %v172
      %v874 = vld.sshfl [vmem:[#allocation1] sm:$0xff pattern:$0x75316420]
      %v875 = vld.sshfl [vmem:[#allocation1 + $0x8] sm:$0xff pattern:$0x75316420]
      %v876 = vld.sshfl [vmem:[#allocation1 + $0x10] sm:$0xff pattern:$0x75316420]
      %877 = vrot.lane.b32.xlu0 %v874, 111
      %v878 = vpop.permute.xlu0 %877
      %879 = vrot.lane.b32.xlu0 %v875, 111
      %v880 = vpop.permute.xlu0 %879
      %881 = vrot.lane.b32.xlu0 %v876, 111
      %v882 = vpop.permute.xlu0 %881
      %v883 = vsel %vm522, %v878, %v880
      %v884 = vsel %vm522, %v880, %v882
      %887 = vst [vmem:[%s170] sm:$0xf] %v883
      %888 = vst [vmem:[%s170 + $0x8] sm:$0xf] %v884
      %v891 = vrot.slane %v869, 4
      %v892 = vrot.slane %v870, 4
      %895 = vst [vmem:[%s170] sm:$0xf0] %v891
      %896 = vst [vmem:[%s170 + $0x8] sm:$0xf0] %v892
      %897 = vst [vmem:[%s170 + $0x10] sm:$0xf] %v891
      %898 = vst [vmem:[%s170 + $0x18] sm:$0xf] %v892
      %p899 = scmp.lt.s32.totalorder %s14, 1
      %s900 = scalar_select %p899, %s14, 1
      %s901 = smul.addr %s900, 4
      %s902 = smul.addr %s901, 8
      %s903 = scalar_lea.vmem %s3, %s902
      // Predicated region
      $region33: #{dense_layer.1} parent=31 // pred_check
        %p904 = pneg %p100
      $region34: #{dense_layer.1} parent=31 // pred_check_branch
        %906 = sbr.rel (%p904) target = $region36
      $region35: #{dense_layer.1} parent=31 // pred_region
        _
      $region36: #{dense_layer.1} parent=31 // pred_fallthru
        _
    $region32: #{dense_layer.1} parent=5 // pred_fallthru
      _
    %p907 = scmp.le.s32.totalorder 2, %s9
    // Predicated region
    $region37: #{dense_layer.1} parent=5 // pred_check
      %p908 = pneg %p907
    $region38: #{dense_layer.1} parent=5 // pred_check_branch
      %910 = sbr.rel (%p908) target = $region40
    $region39: #{dense_layer.1} parent=5 // pred_region
      %s911 = ssub.s32 %s9, 2
      // Predicated region
      $region41: #{dense_layer.1} parent=39 // pred_check
        %p912 = pneg %p106
      $region42: #{dense_layer.1} parent=39 // pred_check_branch
        %914 = sbr.rel (%p912) target = $region44
      $region43: #{dense_layer.1} parent=39 // pred_region
        %p915 = scmp.lt.s32.totalorder %s15, 1
        %s916 = scalar_select %p915, %s15, 1
        %s917 = smul.addr %s916, 4
        %s918 = smul.addr %s917, 8
        %s919 = scalar_lea.vmem %s3, %s918
      $region44: #{dense_layer.1} parent=39 // pred_fallthru
        _
    $region40: #{dense_layer.1} parent=5 // pred_fallthru
      _
  $region6: #{dense_layer.1} parent=0 // loop_footer
    %s13 = sadd.s32 1, %s9
  $region7: #{dense_layer.1} parent=0 // loop_footer_branch
    %8 = sbr.rel target = $region3
  $region8: #{dense_layer.1} parent=0 // loop_exit
    _

</llo_original>
